<compile_context>
chip_gen: v7x
topology: tpu7x:2x2x1
jax: 0.10.0
libtpu: 0.0.40
codegen_flags: <defaults>
</compile_context>

<pallas_src>
import functools

import jax
import jax.numpy as jnp
import numpy as np
from jax.experimental import pallas as pl
from jax.experimental.pallas import tpu as pltpu

_LANE = 128
_SUB = 8


def _round_up(v, m):
    return (v + m - 1) // m * m


def _voigt_weighted_taps(wavelengths, sigma_g, sigma_l, *, kernel_size,
                         resolution, slit_width, slit_spacing, blaze_angle):
    """(K,) normalized, diffraction-weighted Voigt taps (mirrors the torch code)."""
    K = kernel_size
    base = jnp.linspace(-K // 2, K // 2, K, dtype=jnp.float32) * jnp.float32(resolution)
    wl = wavelengths[:K].astype(jnp.float32)
    sin_b = jnp.sin(jnp.float32(blaze_angle))
    beta = jnp.pi * jnp.float32(slit_width) * sin_b / wl
    gamma = jnp.pi * jnp.float32(slit_spacing) * sin_b / wl
    # TODO(synk): sinc singularity if beta/gamma hits 0 exactly (same as torch).
    diff = (jnp.sin(beta) / beta) ** 2 * (jnp.sin(gamma) / gamma) ** 2

    sg = jnp.asarray(sigma_g, jnp.float32).reshape(())
    sl = jnp.asarray(sigma_l, jnp.float32).reshape(())
    g = jnp.exp(-0.5 * (base / sg) ** 2)
    g = g / jnp.sum(g)
    lz = 1.0 / (1.0 + (base / sl) ** 2)
    lz = lz / jnp.sum(lz)
    v = g * lz
    v = v / jnp.sum(v)
    wk = v * diff
    return (wk / jnp.sum(wk)).astype(jnp.float32)


def _tconv_tile_kernel(x_cur_ref, x_prev_ref, w_cur_ref, w_halo_ref, bias_ref,
                       o_ref, *, compute_dtype):
    """One (TN, TO) output tile of the transposed conv.

    x_cur_ref  : (TN, TL)     VMEM   input block j
    x_prev_ref : (TN, TL)     VMEM   input block j-1 (block 0 again when j==0; gated)
    w_cur_ref  : (TL, TO)     VMEM   j-independent scatter matrix, fetched once
    w_halo_ref : (halo_p, TO) VMEM   j-independent halo scatter matrix, fetched once
    bias_ref   : (1,)         SMEM   scalar bias
    o_ref      : (TN, TO)     VMEM   output tile (TO = TL*stride, lane-dense)
    """
    j = pl.program_id(1)
    tl = x_prev_ref.shape[-1]
    halo_p = w_halo_ref.shape[0]

    x_cur = x_cur_ref[...].astype(compute_dtype)
    acc = jnp.dot(x_cur, w_cur_ref[...].astype(compute_dtype),
                  preferred_element_type=jnp.float32)

    # Halo: last halo_p columns of the previous input block; zeroed for j == 0.
    gate = (j > 0).astype(compute_dtype)
    halo_x = x_prev_ref[:, tl - halo_p:].astype(compute_dtype) * gate
    acc = acc + jnp.dot(halo_x, w_halo_ref[...].astype(compute_dtype),
                        preferred_element_type=jnp.float32)

    o_ref[...] = (acc + bias_ref[0]).astype(o_ref.dtype)


@functools.partial(
    jax.jit,
    static_argnames=("kernel_size", "stride", "use_bias", "input_tile",
                     "batch_tile", "compute_dtype"))
def broadening_trans_conv(x, wavelengths, sigma_g, sigma_l, bias, *,
                          kernel_size, stride=1, resolution=0.36,
                          slit_width=5000.0, slit_spacing=1667.0,
                          blaze_angle=0.09, use_bias=True,
                          input_tile=256, batch_tile=128,
                          compute_dtype=jnp.float32):
    """Pallas implementation of BroadeningTransConvLayer.forward (mode='voigt').

    x: (N, 1, L) float32 (PyTorch NCL layout). Returns (N, 1, (L-1)*stride + K).
    """
    N, C, L = x.shape
    assert C == 1, "conv_transpose1d weight is (1, 1, K) -> single channel"
    assert input_tile % _LANE == 0 and batch_tile % _SUB == 0
    K = kernel_size
    L_out = (L - 1) * stride + K

    # ---- kernel taps (hoisted out of the Pallas kernel) --------------------
    wk = _voigt_weighted_taps(
        wavelengths, sigma_g, sigma_l, kernel_size=K, resolution=resolution,
        slit_width=slit_width, slit_spacing=slit_spacing, blaze_angle=blaze_angle)

    # ---- tile geometry ------------------------------------------------------
    TL = min(input_tile, _round_up(L, _LANE))      # input columns per tile
    TO = TL * stride                               # output columns per tile (mult of 128)
    halo = (K - 1) // stride                       # prev-block columns reaching tile j
    assert halo <= TL, "kernel_size too large for the chosen input tile"
    halo_p = max(_SUB, _round_up(halo, _SUB))

    TN = min(batch_tile, _round_up(N, _SUB))       # batch rows per tile
    N_pad = _round_up(N, TN)
    # Enough (zero-)padded input columns so the union of output tiles covers L_out.
    L_pad = _round_up(max(L, L - 1 + pl.cdiv(K, stride)), TL)
    n_j = L_pad // TL
    L_out_pad = n_j * TO

    x2d = jnp.pad(x.reshape(N, L).astype(jnp.float32),
                  ((0, N_pad - N), (0, L_pad - L)))

    # ---- grid-step-independent scatter (Toeplitz band) matrices -------------
    c = jnp.arange(TO, dtype=jnp.int32)[None, :]
    r = jnp.arange(TL, dtype=jnp.int32)[:, None]
    k_cur = c - r * stride                          # tap index for in-block rows
    w_cur = jnp.where((k_cur >= 0) & (k_cur < K),
                      wk[jnp.clip(k_cur, 0, K - 1)], 0.0).astype(jnp.float32)
    rr = jnp.arange(halo_p, dtype=jnp.int32)[:, None]
    k_halo = c + (halo_p - rr) * stride             # tap index for halo rows
    w_halo = jnp.where((k_halo >= 0) & (k_halo < K),
                       wk[jnp.clip(k_halo, 0, K - 1)], 0.0).astype(jnp.float32)

    bias_arr = (jnp.asarray(bias, jnp.float32).reshape(1) if use_bias
                else jnp.zeros((1,), jnp.float32))

    vmem = pltpu.MemorySpace.VMEM
    smem = pltpu.MemorySpace.SMEM
    grid = (N_pad // TN, n_j)

    out_pad = pl.pallas_call(
        functools.partial(_tconv_tile_kernel, compute_dtype=compute_dtype),
        out_shape=jax.ShapeDtypeStruct((N_pad, L_out_pad), jnp.float32),
        grid=grid,
        in_specs=[
            # current input block
            pl.BlockSpec((TN, TL), lambda i, j: (i, j), memory_space=vmem),
            # previous input block (clamped at 0; gated inside the kernel)
            pl.BlockSpec((TN, TL), lambda i, j: (i, jnp.maximum(j - 1, 0)),
                         memory_space=vmem),
            # constant scatter matrices: DMA'd once, reused across the grid
            pl.BlockSpec((TL, TO), lambda i, j: (0, 0), memory_space=vmem),
            pl.BlockSpec((halo_p, TO), lambda i, j: (0, 0), memory_space=vmem),
            # scalar bias via SMEM
            pl.BlockSpec(memory_space=smem),
        ],
        out_specs=pl.BlockSpec((TN, TO), lambda i, j: (i, j), memory_space=vmem),
        compiler_params=pltpu.CompilerParams(
            dimension_semantics=("parallel", "parallel"),
            vmem_limit_bytes=32 * 1024 * 1024),
    )(x2d, x2d, w_cur, w_halo, bias_arr)

    return out_pad[:N, :L_out].reshape(N, 1, L_out)


def _reference(x, wavelengths, sigma_g, sigma_l, bias, *, kernel_size, stride,
               resolution=0.36, slit_width=5000.0, slit_spacing=1667.0,
               blaze_angle=0.09):
    """Gold reference: explicit conv_transpose1d scatter in float64 (numpy)."""
    N, _, L = x.shape
    K = kernel_size
    wk = np.asarray(_voigt_weighted_taps(
        wavelengths, sigma_g, sigma_l, kernel_size=K, resolution=resolution,
        slit_width=slit_width, slit_spacing=slit_spacing,
        blaze_angle=blaze_angle), np.float64)
    L_out = (L - 1) * stride + K
    W = np.zeros((L, L_out), np.float64)
    for l in range(L):
        W[l, l * stride:l * stride + K] = wk
    x2d = np.asarray(x, np.float64).reshape(N, L)
    out = x2d @ W + float(np.asarray(bias).reshape(-1)[0])
    return out.reshape(N, 1, L_out)


if __name__ == "__main__":
    key = jax.random.PRNGKey(0)
    configs = [
        dict(N=2, L=16, K=8, stride=2),    # single tile (original small case)
        dict(N=3, L=300, K=8, stride=1),   # multi-tile, cross-tile halo
        dict(N=2, L=300, K=8, stride=2),   # multi-tile, strided halo
    ]
    for cfg in configs:
        N, L, K, stride = cfg["N"], cfg["L"], cfg["K"], cfg["stride"]
        key, kx, kg, kl = jax.random.split(key, 4)

        x = jax.random.normal(kx, (N, 1, L), dtype=jnp.float32)
        wavelengths = jnp.linspace(500.0, 600.0, K, dtype=jnp.float32)
        # ~ torch init (rand(1)*K/30, rand(1)*K/60); floored away from 0 so the
        # Gaussian taps cannot all underflow (that would NaN in torch too).
        sigma_g = (0.3 + 0.7 * jax.random.uniform(kg, ())) * K / 30.0
        sigma_l = (0.3 + 0.7 * jax.random.uniform(kl, ())) * K / 60.0
        bias = jnp.zeros(())  # nn.Parameter(torch.zeros(1))

        out = broadening_trans_conv(x, wavelengths, sigma_g, sigma_l, bias,
                                    kernel_size=K, stride=stride)
        out = jax.block_until_ready(out)

        ref = _reference(np.asarray(x), wavelengths, sigma_g, sigma_l, bias,
                         kernel_size=K, stride=stride)
        assert out.shape == (N, 1, (L - 1) * stride + K)
        np.testing.assert_allclose(np.asarray(out), ref, rtol=1e-4, atol=1e-5)

    print("KERNEL_OK")
</pallas_src>

<mosaic_0001>
module attributes {stable_mosaic.version = 11 : i64} {
  func.func @_tconv_tile_kernel(%arg0: i32, %arg1: i32, %arg2: memref<8x128xf32, #tpu.memory_space<vmem>>, %arg3: memref<8x128xf32, #tpu.memory_space<vmem>>, %arg4: memref<128x256xf32, #tpu.memory_space<vmem>>, %arg5: memref<8x256xf32, #tpu.memory_space<vmem>>, %arg6: memref<1xf32, #tpu.memory_space<smem>>, %arg7: memref<8x256xf32, #tpu.memory_space<vmem>>) attributes {dimension_semantics = [#tpu.dimension_semantics<parallel>, #tpu.dimension_semantics<parallel>], iteration_bounds = array<i64: 1, 1>, scalar_prefetch = 0 : i64, scratch_operands = 0 : i64, tpu.core_type = #tpu.core_type<tc>, window_params = [{transform_indices = @transform_0, window_bounds = array<i64: 8, 128>}, {transform_indices = @transform_1, window_bounds = array<i64: 8, 128>}, {pipeline_mode = #tpu.pipeline_mode<synchronous>, transform_indices = @transform_2, window_bounds = array<i64: 128, 256>}, {pipeline_mode = #tpu.pipeline_mode<synchronous>, transform_indices = @transform_3, window_bounds = array<i64: 8, 256>}, {transform_indices = @transform_4, window_bounds = array<i64: 1>}, {transform_indices = @transform_5, window_bounds = array<i64: 8, 256>}]} {
    %c0 = arith.constant 0 : index
    %c0_0 = arith.constant 0 : index
    %0 = vector.load %arg2[%c0, %c0_0] : memref<8x128xf32, #tpu.memory_space<vmem>>, vector<8x128xf32>
    %c0_1 = arith.constant 0 : index
    %c0_2 = arith.constant 0 : index
    %1 = vector.load %arg4[%c0_1, %c0_2] : memref<128x256xf32, #tpu.memory_space<vmem>>, vector<128x256xf32>
    %cst = arith.constant dense<0.000000e+00> : vector<8x256xf32>
    %2 = tpu.matmul %0, %1, %cst {dimension_numbers = #tpu.dot_dimension_numbers<[1], [0], [0], [1], [0, 0, 1, 1], [], []>} : vector<8x128xf32>, vector<128x256xf32>, vector<8x256xf32> -> vector<8x256xf32>
    %c0_i32 = arith.constant 0 : i32
    %3 = arith.cmpi sgt, %arg1, %c0_i32 : i32
    %4 = arith.extui %3 : i1 to i32
    %5 = arith.sitofp %4 : i32 to f32
    %c0_3 = arith.constant 0 : index
    %c120 = arith.constant 120 : index
    %6 = vector.load %arg3[%c0_3, %c120] : memref<8x128xf32, #tpu.memory_space<vmem>>, vector<8x8xf32>
    %7 = vector.broadcast %5 : f32 to vector<8x8xf32>
    %8 = arith.mulf %6, %7 : vector<8x8xf32>
    %c0_4 = arith.constant 0 : index
    %c0_5 = arith.constant 0 : index
    %9 = vector.load %arg5[%c0_4, %c0_5] : memref<8x256xf32, #tpu.memory_space<vmem>>, vector<8x256xf32>
    %cst_6 = arith.constant dense<0.000000e+00> : vector<8x256xf32>
    %10 = tpu.matmul %8, %9, %cst_6 {dimension_numbers = #tpu.dot_dimension_numbers<[1], [0], [0], [1], [0, 0, 1, 1], [], []>} : vector<8x8xf32>, vector<8x256xf32>, vector<8x256xf32> -> vector<8x256xf32>
    %11 = arith.addf %2, %10 : vector<8x256xf32>
    %c0_7 = arith.constant 0 : index
    %12 = memref.load %arg6[%c0_7] : memref<1xf32, #tpu.memory_space<smem>>
    %13 = vector.broadcast %12 : f32 to vector<8x256xf32>
    %14 = arith.addf %11, %13 : vector<8x256xf32>
    %c0_8 = arith.constant 0 : index
    %c0_9 = arith.constant 0 : index
    %15 = vector.load %arg7[%c0_8, %c0_9] : memref<8x256xf32, #tpu.memory_space<vmem>>, vector<8x256xf32>
    tpu.vector_store %arg7[%c0_8, %c0_9], %14 {strides = array<i32>} : memref<8x256xf32, #tpu.memory_space<vmem>>, vector<8x256xf32>,
    return
  }
  func.func @transform_0(%arg0: i32, %arg1: i32) -> (i32, i32) {
    %c0_i32 = arith.constant 0 : i32
    return %arg0, %arg1 : i32, i32
  }
  func.func @transform_1(%arg0: i32, %arg1: i32) -> (i32, i32) {
    %c1_i32 = arith.constant 1 : i32
    %0 = arith.subi %arg1, %c1_i32 : i32
    %c0_i32 = arith.constant 0 : i32
    %1 = arith.maxsi %0, %c0_i32 : i32
    %c0_i32_0 = arith.constant 0 : i32
    return %arg0, %1 : i32, i32
  }
  func.func @transform_2(%arg0: i32, %arg1: i32) -> (i32, i32) {
    %c0_i32 = arith.constant 0 : i32
    %c0_i32_0 = arith.constant 0 : i32
    %c0_i32_1 = arith.constant 0 : i32
    return %c0_i32, %c0_i32_0 : i32, i32
  }
  func.func @transform_3(%arg0: i32, %arg1: i32) -> (i32, i32) {
    %c0_i32 = arith.constant 0 : i32
    %c0_i32_0 = arith.constant 0 : i32
    %c0_i32_1 = arith.constant 0 : i32
    return %c0_i32, %c0_i32_0 : i32, i32
  }
  func.func @transform_4(%arg0: i32, %arg1: i32) -> i32 {
    %c0_i32 = arith.constant 0 : i32
    %c0_i32_0 = arith.constant 0 : i32
    return %c0_i32 : i32
  }
  func.func @transform_5(%arg0: i32, %arg1: i32) -> (i32, i32) {
    %c0_i32 = arith.constant 0 : i32
    return %arg0, %arg1 : i32, i32
  }
}

</mosaic_0001>

<llo_original>
// kernel: broadening_trans_conv.1
$region0: #{broadening_trans_conv.1}
  #allocation0 [shape = 'u32[]', space=smem, size = 0x4, offset = 0x4, fixed_abs, tag = 'smem constant byte address 0x4 - core index']
  #allocation1 [shape = 'u32[144,128]{1,0:T(1,128)}', space=vmem, size = 0x12000, scoped, tag = 'internal scratch']
  #allocation2 [shape = 'f32[1]{0:T(128)S(6)}', space=smem, size = 0x200, scoped, tag = 'scoped memory for broadening_trans_conv.1']
  %s0 = inlined_call_operand.vmem [shape: f32[8,128], index: 0, kind: input, shape index: {}, may-alias: {0,1}]
  %s1 = inlined_call_operand.vmem [shape: f32[8,128], index: 1, kind: input, shape index: {}, may-alias: {0,1}]
  %s2 = inlined_call_operand.vmem [shape: f32[128,256], index: 2, kind: input, shape index: {}]
  %s3 = inlined_call_operand.vmem [shape: f32[8,256], index: 3, kind: input, shape index: {}]
  %s4 = inlined_call_operand.<no memory space> [shape: f32[1], index: 4, kind: input, shape index: {}]
  %s5 = inlined_call_operand.vmem [shape: f32[8,256], index: 5, kind: output, shape index: {}]
  %s6 = sld [smem:[#allocation0]]
  $region30: #{broadening_trans_conv.1} parent=0
    _
  %s8 = ssub.s32 1, %s6
  %s9 = scalar_select 0, %s8, %s6
  %10 = sst [smem:[#allocation2]] %s4
  // Predicated region
  $region2: #{broadening_trans_conv.1} parent=0 // pred_check
    _
  $region3: #{broadening_trans_conv.1} parent=0 // pred_check_branch
    %12 = sbr.rel (0) target = $region5
  $region4: #{broadening_trans_conv.1} parent=0 // pred_region
    _
  $region5: #{broadening_trans_conv.1} parent=0 // pred_fallthru
    _
  // Predicated region
  $region6: #{broadening_trans_conv.1} parent=0 // pred_check
    _
  $region7: #{broadening_trans_conv.1} parent=0 // pred_check_branch
    %14 = sbr.rel (0) target = $region9
  $region8: #{broadening_trans_conv.1} parent=0 // pred_region
    %s15 = ssub.s32 0, 1
    %p16 = scmp.gt.s32.totalorder %s15, 0
    %s17 = scalar_select %p16, %s15, 0
    %p18 = scmp.lt.s32.totalorder %s17, 0
    %s19 = scalar_select %p18, %s17, 0
    %s20 = smul.addr %s19, 8
    %s21 = scalar_lea.vmem %s1, %s20
    %s22 = ssub.s32 0, 1
    %p23 = scmp.gt.s32.totalorder %s22, 0
    %s24 = scalar_select %p23, %s22, 0
  $region9: #{broadening_trans_conv.1} parent=0 // pred_fallthru
    _
  // Predicated region
  $region10: #{broadening_trans_conv.1} parent=0 // pred_check
    _
  $region11: #{broadening_trans_conv.1} parent=0 // pred_check_branch
    %26 = sbr.rel (0) target = $region13
  $region12: #{broadening_trans_conv.1} parent=0 // pred_region
    _
  $region13: #{broadening_trans_conv.1} parent=0 // pred_fallthru
    _
  // Predicated region
  $region14: #{broadening_trans_conv.1} parent=0 // pred_check
    _
  $region15: #{broadening_trans_conv.1} parent=0 // pred_check_branch
    %28 = sbr.rel (0) target = $region17
  $region16: #{broadening_trans_conv.1} parent=0 // pred_region
    _
  $region17: #{broadening_trans_conv.1} parent=0 // pred_fallthru
    _
  // Predicated region
  $region18: #{broadening_trans_conv.1} parent=0 // pred_check
    _
  $region19: #{broadening_trans_conv.1} parent=0 // pred_check_branch
    %30 = sbr.rel (0) target = $region21
  $region20: #{broadening_trans_conv.1} parent=0 // pred_region
    _
  $region21: #{broadening_trans_conv.1} parent=0 // pred_fallthru
    _
  %s31 = ssub.s32 0, 1
  %p32 = scmp.gt.s32.totalorder %s31, 0
  %s33 = scalar_select %p32, %s31, 0
  %p34 = scmp.lt.s32.totalorder %s33, 0
  %s35 = scalar_select %p34, %s33, 0
  %s36 = smul.addr %s35, 8
  %s37 = scalar_lea.vmem %s1, %s36
  %s38 = ssub.s32 0, 1
  %p39 = scmp.gt.s32.totalorder %s38, 0
  %s40 = scalar_select %p39, %s38, 0
  %p41 = scmp.lt.s32.totalorder %s40, 0
  %s42 = scalar_select %p41, %s40, 0
  %s43 = smul.addr %s42, 8
  %s44 = scalar_lea.vmem %s1, %s43
  %s45 = ssub.s32 0, 1
  %p46 = scmp.gt.s32.totalorder %s45, 0
  %s47 = scalar_select %p46, %s45, 0
  %v48 = vld [vmem:[%s0] sm:$0xff]
  %v49 = vld [vmem:[%s2] sm:$0xff]
  %v50 = vld [vmem:[%s2 + $0x8] sm:$0xff]
  %v51 = vld [vmem:[%s2 + $0x10] sm:$0xff]
  %v52 = vld [vmem:[%s2 + $0x18] sm:$0xff]
  %v53 = vld [vmem:[%s2 + $0x20] sm:$0xff]
  %v54 = vld [vmem:[%s2 + $0x28] sm:$0xff]
  %v55 = vld [vmem:[%s2 + $0x30] sm:$0xff]
  %v56 = vld [vmem:[%s2 + $0x38] sm:$0xff]
  %v57 = vld [vmem:[%s2 + $0x40] sm:$0xff]
  %v58 = vld [vmem:[%s2 + $0x48] sm:$0xff]
  %v59 = vld [vmem:[%s2 + $0x50] sm:$0xff]
  %v60 = vld [vmem:[%s2 + $0x58] sm:$0xff]
  %v61 = vld [vmem:[%s2 + $0x60] sm:$0xff]
  %v62 = vld [vmem:[%s2 + $0x68] sm:$0xff]
  %v63 = vld [vmem:[%s2 + $0x70] sm:$0xff]
  %v64 = vld [vmem:[%s2 + $0x78] sm:$0xff]
  %v65 = vld [vmem:[%s2 + $0x80] sm:$0xff]
  %v66 = vld [vmem:[%s2 + $0x88] sm:$0xff]
  %v67 = vld [vmem:[%s2 + $0x90] sm:$0xff]
  %v68 = vld [vmem:[%s2 + $0x98] sm:$0xff]
  %v69 = vld [vmem:[%s2 + $0xa0] sm:$0xff]
  %v70 = vld [vmem:[%s2 + $0xa8] sm:$0xff]
  %v71 = vld [vmem:[%s2 + $0xb0] sm:$0xff]
  %v72 = vld [vmem:[%s2 + $0xb8] sm:$0xff]
  %v73 = vld [vmem:[%s2 + $0xc0] sm:$0xff]
  %v74 = vld [vmem:[%s2 + $0xc8] sm:$0xff]
  %v75 = vld [vmem:[%s2 + $0xd0] sm:$0xff]
  %v76 = vld [vmem:[%s2 + $0xd8] sm:$0xff]
  %v77 = vld [vmem:[%s2 + $0xe0] sm:$0xff]
  %v78 = vld [vmem:[%s2 + $0xe8] sm:$0xff]
  %v79 = vld [vmem:[%s2 + $0xf0] sm:$0xff]
  %v80 = vld [vmem:[%s2 + $0xf8] sm:$0xff]
  %p81 = scmp.gt.s32.totalorder 0, 0
  %s82 = scalar_select %p81, 1, 0
  %s83 = scvt.s32.f32 %s82
  %v84 = vld [vmem:[%s44] sm:$0xff]
  %v85 = vstv %s83
  %v86 = vmul.f32 %v84, %v85
  %v87 = vld [vmem:[%s3] sm:$0xff]
  %v88 = vld [vmem:[%s3 + $0x8] sm:$0xff]
  %90 = vrot.lane.b32.xlu0 %v86, 8
  %v91 = vpop.permute.xlu0 %90
  %vm92 = vcmask 64512
  %v93 = vsel %vm92, %v91, 0
  %95 = vmatprep.subr.mxu0 %v88
  %96 = vmatpush1.msra.mxu0 %v87
  %97 = vmatprep.subr.mxu0 0.0
  %98 = vmatpush1.msra.mxu0 0.0
  %99 = vmatprep.subr.mxu0 0.0
  %100 = vmatpush1.msra.mxu0 0.0
  %101 = vmatprep.subr.mxu0 0.0
  %102 = vmatpush1.msra.mxu0 0.0
  %103 = vmatprep.subr.mxu0 0.0
  %104 = vmatpush1.msra.mxu0 0.0
  %105 = vmatprep.subr.mxu0 0.0
  %106 = vmatpush1.msra.mxu0 0.0
  %107 = vmatprep.subr.mxu0 0.0
  %108 = vmatpush1.msra.mxu0 0.0
  %109 = vmatprep.subr.mxu0 0.0
  %110 = vmatpush1.msra.mxu0 0.0
  %111 = vmatprep.subr.mxu0 0.0
  %112 = vmatpush1.msra.mxu0 0.0
  %113 = vmatprep.subr.mxu0 0.0
  %114 = vmatpush1.msra.mxu0 0.0
  %115 = vmatprep.subr.mxu0 0.0
  %116 = vmatpush1.msra.mxu0 0.0
  %117 = vmatprep.subr.mxu0 0.0
  %118 = vmatpush1.msra.mxu0 0.0
  %119 = vmatprep.subr.mxu0 0.0
  %120 = vmatpush1.msra.mxu0 0.0
  %121 = vmatprep.subr.mxu0 0.0
  %122 = vmatpush1.msra.mxu0 0.0
  %123 = vmatprep.subr.mxu0 0.0
  %124 = vmatpush1.msra.mxu0 0.0
  %125 = vmatprep.subr.mxu0 0.0
  %126 = vmatpush1.msra.mxu0 0.0
  %127 = vmatprep.subr.mxu0 0.0
  %128 = vmatpush1.msra.mxu0 0.0
  %129 = vmatprep.subr.mxu0 0.0
  %130 = vmatpush1.msra.mxu0 0.0
  %131 = vmatprep.subr.mxu0 0.0
  %132 = vmatpush1.msra.mxu0 0.0
  %133 = vmatprep.subr.mxu0 0.0
  %134 = vmatpush1.msra.mxu0 0.0
  %135 = vmatprep.subr.mxu0 0.0
  %136 = vmatpush1.msra.mxu0 0.0
  %137 = vmatprep.subr.mxu0 0.0
  %138 = vmatpush1.msra.mxu0 0.0
  %139 = vmatprep.subr.mxu0 0.0
  %140 = vmatpush1.msra.mxu0 0.0
  %141 = vmatprep.subr.mxu0 0.0
  %142 = vmatpush1.msra.mxu0 0.0
  %143 = vmatprep.subr.mxu0 0.0
  %144 = vmatpush1.msra.mxu0 0.0
  %145 = vmatprep.subr.mxu0 0.0
  %146 = vmatpush1.msra.mxu0 0.0
  %147 = vmatprep.subr.mxu0 0.0
  %148 = vmatpush1.msra.mxu0 0.0
  %149 = vmatprep.subr.mxu0 0.0
  %150 = vmatpush1.msra.mxu0 0.0
  %151 = vmatprep.subr.mxu0 0.0
  %152 = vmatpush1.msra.mxu0 0.0
  %153 = vmatprep.subr.mxu0 0.0
  %154 = vmatpush1.msra.mxu0 0.0
  %155 = vmatprep.subr.mxu0 0.0
  %156 = vmatpush1.msra.mxu0 0.0
  %157 = vmatprep.subr.mxu0 0.0
  %158 = vmatpush1.msra.mxu0 0.0
  %159 = vmatprep.mubr.f32.mxu0 0.0
  %160 = vmatmul.mubr.f32.gmra.mrb[0].mxu0 %v93
  %v161 = vpop.f32.mrb[0].mxu0
  %v162 = vadd.f32 0.0, %v161
  %v163 = vpop.f32.mrb[0].mxu0
  %v164 = vadd.f32 0.0, %v163
  %165 = vdwg.mxu0
  %166 = vmatprep.subr.mxu0 %v50
  %167 = vmatpush1.msra.mxu0 %v49
  %168 = vmatprep.subr.mxu0 %v52
  %169 = vmatpush1.msra.mxu0 %v51
  %170 = vmatprep.subr.mxu0 %v54
  %171 = vmatpush1.msra.mxu0 %v53
  %172 = vmatprep.subr.mxu0 %v56
  %173 = vmatpush1.msra.mxu0 %v55
  %174 = vmatprep.subr.mxu0 %v58
  %175 = vmatpush1.msra.mxu0 %v57
  %176 = vmatprep.subr.mxu0 %v60
  %177 = vmatpush1.msra.mxu0 %v59
  %178 = vmatprep.subr.mxu0 %v62
  %179 = vmatpush1.msra.mxu0 %v61
  %180 = vmatprep.subr.mxu0 %v64
  %181 = vmatpush1.msra.mxu0 %v63
  %182 = vmatprep.subr.mxu0 %v66
  %183 = vmatpush1.msra.mxu0 %v65
  %184 = vmatprep.subr.mxu0 %v68
  %185 = vmatpush1.msra.mxu0 %v67
  %186 = vmatprep.subr.mxu0 %v70
  %187 = vmatpush1.msra.mxu0 %v69
  %188 = vmatprep.subr.mxu0 %v72
  %189 = vmatpush1.msra.mxu0 %v71
  %190 = vmatprep.subr.mxu0 %v74
  %191 = vmatpush1.msra.mxu0 %v73
  %192 = vmatprep.subr.mxu0 %v76
  %193 = vmatpush1.msra.mxu0 %v75
  %194 = vmatprep.subr.mxu0 %v78
  %195 = vmatpush1.msra.mxu0 %v77
  %196 = vmatprep.subr.mxu0 %v80
  %197 = vmatpush1.msra.mxu0 %v79
  %198 = vmatprep.subr.mxu0 0.0
  %199 = vmatpush1.msra.mxu0 0.0
  %200 = vmatprep.subr.mxu0 0.0
  %201 = vmatpush1.msra.mxu0 0.0
  %202 = vmatprep.subr.mxu0 0.0
  %203 = vmatpush1.msra.mxu0 0.0
  %204 = vmatprep.subr.mxu0 0.0
  %205 = vmatpush1.msra.mxu0 0.0
  %206 = vmatprep.subr.mxu0 0.0
  %207 = vmatpush1.msra.mxu0 0.0
  %208 = vmatprep.subr.mxu0 0.0
  %209 = vmatpush1.msra.mxu0 0.0
  %210 = vmatprep.subr.mxu0 0.0
  %211 = vmatpush1.msra.mxu0 0.0
  %212 = vmatprep.subr.mxu0 0.0
  %213 = vmatpush1.msra.mxu0 0.0
  %214 = vmatprep.subr.mxu0 0.0
  %215 = vmatpush1.msra.mxu0 0.0
  %216 = vmatprep.subr.mxu0 0.0
  %217 = vmatpush1.msra.mxu0 0.0
  %218 = vmatprep.subr.mxu0 0.0
  %219 = vmatpush1.msra.mxu0 0.0
  %220 = vmatprep.subr.mxu0 0.0
  %221 = vmatpush1.msra.mxu0 0.0
  %222 = vmatprep.subr.mxu0 0.0
  %223 = vmatpush1.msra.mxu0 0.0
  %224 = vmatprep.subr.mxu0 0.0
  %225 = vmatpush1.msra.mxu0 0.0
  %226 = vmatprep.subr.mxu0 0.0
  %227 = vmatpush1.msra.mxu0 0.0
  %228 = vmatprep.subr.mxu0 0.0
  %229 = vmatpush1.msra.mxu0 0.0
  %230 = vmatprep.mubr.f32.mxu0 0.0
  %231 = vmatmul.mubr.f32.gmra.mrb[0].mxu0 %v48
  %v232 = vpop.f32.mrb[0].mxu0
  %v233 = vadd.f32 %v162, %v232
  %v234 = vpop.f32.mrb[0].mxu0
  %v235 = vadd.f32 %v164, %v234
  %236 = vdwg.mxu0
  %s237 = sld [smem:[#allocation2]]
  %v238 = vstv %s237
  %v239 = vadd.f32 %v233, %v238
  %v240 = vadd.f32 %v235, %v238
  %241 = vst [vmem:[%s5] sm:$0xff] %v239
  %242 = vst [vmem:[%s5 + $0x8] sm:$0xff] %v240
  // Predicated region
  $region22: #{broadening_trans_conv.1} parent=0 // pred_check
    _
  $region23: #{broadening_trans_conv.1} parent=0 // pred_check_branch
    %244 = sbr.rel (0) target = $region25
  $region24: #{broadening_trans_conv.1} parent=0 // pred_region
    _
  $region25: #{broadening_trans_conv.1} parent=0 // pred_fallthru
    _
  // Predicated region
  $region26: #{broadening_trans_conv.1} parent=0 // pred_check
    _
  $region27: #{broadening_trans_conv.1} parent=0 // pred_check_branch
    %246 = sbr.rel (0) target = $region29
  $region28: #{broadening_trans_conv.1} parent=0 // pred_region
    _
  $region29: #{broadening_trans_conv.1} parent=0 // pred_fallthru
    _

</llo_original>
